<compile_context>
chip_gen: v7x
topology: tpu7x:2x2x1
jax: 0.10.0
libtpu: 0.0.40
codegen_flags: <defaults>
</compile_context>

<pallas_src>
import jax
import jax.numpy as jnp
from jax.experimental import pallas as pl
from jax.experimental.pallas import tpu as pltpu


def _patch_inflated_kernel(x_ref, halo_ref, w_ref, b_ref, o_ref):
    # x_ref:    (1, Ht*W, Cin)    row tile of the flattened (B, H*W, Cin) input
    # halo_ref: (1, W, Cin)       first input row of the next row tile (clamped on last tile)
    # w_ref:    (4*Cin, 4*Cout)   phase-folded transposed-conv weights
    # b_ref:    (4*Cout, 1)       phase-tiled bias
    # o_ref:    (1, 1, 4*Cout, Ht*W)  phase/channel-major output tile (lane-dense stores)
    M = x_ref.shape[1]
    W = halo_ref.shape[1]
    Cin = x_ref.shape[2]

    t = pl.program_id(1)
    nt = pl.num_programs(1)

    xf = x_ref[0]                                              # (M, Cin)
    # Halo row: zero it on the last row tile (its index_map clamps to an in-range row).
    halo = halo_ref[0] * (t < nt - 1).astype(x_ref.dtype)      # (W, Cin)
    zrow = jnp.zeros((1, Cin), x_ref.dtype)
    xe = jnp.concatenate([xf, halo, zrow], axis=0)             # (M + W + 1, Cin)

    # 2x2 forward neighborhood of every pixel via sublane-offset views of the same tile.
    x00 = xe[0:M]                      # x[r,   c  ]
    x01 = xe[1:M + 1]                  # x[r,   c+1]  (wraps across rows; masked below)
    x10 = xe[W:W + M]                  # x[r+1, c  ]
    x11 = xe[W + 1:W + M + 1]          # x[r+1, c+1]

    # Zero the c+1 neighbors on the right image edge (c == W-1).
    col = jax.lax.broadcasted_iota(jnp.int32, (M, Cin), 0) % W
    keep = col < (W - 1)
    x01 = jnp.where(keep, x01, jnp.zeros_like(x01))
    x11 = jnp.where(keep, x11, jnp.zeros_like(x11))

    # One folded MXU matmul: every pixel's 4 output phases in a single K=4*Cin contraction.
    lhs = jnp.concatenate([x00, x01, x10, x11], axis=1)        # (M, 4*Cin)
    y = jax.lax.dot_general(
        lhs, w_ref[...],
        dimension_numbers=(((1,), (0,)), ((), ())),
        preferred_element_type=jnp.float32)                    # (M, 4*Cout)

    # Transpose so the store is lane-dense (pixels on the lane axis), then add bias.
    yt = y.T + b_ref[...].astype(jnp.float32)                  # (4*Cout, M)
    o_ref[0, 0] = yt.astype(o_ref.dtype)


def patch_inflated_forward(x, weight_t, bias, input_resolution, in_chans, *, row_tile=8):
    """x: (B, L, C); weight_t: (embed_dim, in_chans, 3, 3) PyTorch ConvTranspose2d layout;
    bias: (in_chans,). Returns (B, in_chans, 2H, 2W) NCHW, matching the PyTorch module."""
    H, W = input_resolution
    B, L, Cin = x.shape
    assert L == H * W, "Input feature has wrong size."
    Cout = in_chans

    # Row tile (in input rows); must divide H.
    Ht = min(row_tile, H)
    while H % Ht:
        Ht -= 1
    T = H // Ht
    M = Ht * W

    # --- Fold the 3x3 / stride-2 / pad-1 / out-pad-1 transposed conv into one matrix. ---
    # Output phases (ph, pw) of out[2r+ph, 2c+pw]; input neighbors n0=(r,c), n1=(r,c+1),
    # n2=(r+1,c), n3=(r+1,c+1); K(kh,kw) = weight_t[:, :, kh, kw] of shape (Cin, Cout).
    K = lambda kh, kw: weight_t[:, :, kh, kw]
    Z = jnp.zeros((Cin, Cout), weight_t.dtype)
    #                          P00      P01      P10      P11
    rhs = jnp.concatenate([
        jnp.concatenate([K(1, 1), K(1, 2), K(2, 1), K(2, 2)], axis=1),  # n0 = (r,   c)
        jnp.concatenate([Z,       K(1, 0), Z,       K(2, 0)], axis=1),  # n1 = (r,   c+1)
        jnp.concatenate([Z,       Z,       K(0, 1), K(0, 2)], axis=1),  # n2 = (r+1, c)
        jnp.concatenate([Z,       Z,       Z,       K(0, 0)], axis=1),  # n3 = (r+1, c+1)
    ], axis=0)                                           # (4*Cin, 4*Cout)
    b_packed = jnp.tile(bias, 4).reshape(4 * Cout, 1)    # bias[co] for p = phase*Cout + co

    def halo_index(b, t):
        # First input row of the next row tile; clamped (and zeroed in-kernel) on the last.
        return (b, jnp.minimum((t + 1) * Ht, H - 1), 0)

    out_packed = pl.pallas_call(
        _patch_inflated_kernel,
        out_shape=jax.ShapeDtypeStruct((B, T, 4 * Cout, M), x.dtype),
        grid=(B, T),
        in_specs=[
            pl.BlockSpec((1, M, Cin), lambda b, t: (b, t, 0)),
            pl.BlockSpec((1, W, Cin), halo_index),
            pl.BlockSpec((4 * Cin, 4 * Cout), lambda b, t: (0, 0)),
            pl.BlockSpec((4 * Cout, 1), lambda b, t: (0, 0)),
        ],
        out_specs=pl.BlockSpec((1, 1, 4 * Cout, M), lambda b, t: (b, t, 0, 0)),
        compiler_params=pltpu.CompilerParams(
            dimension_semantics=("parallel", "parallel"),
            vmem_limit_bytes=48 * 1024 * 1024,
        ),
    )(x, x, rhs, b_packed)

    # Pixel-shuffle the phase-packed tiles back to NCHW.
    # TODO(synk): this unshuffle is one extra XLA transpose pass over the output; folding
    # the (W,2)->(2W) lane interleave into the kernel store would remove it.
    o = out_packed.reshape(B, T, 2, 2, Cout, Ht, W)          # [b, t, ph, pw, co, r, c]
    o = jnp.transpose(o, (0, 4, 1, 5, 2, 6, 3))              # [b, co, t, r, ph, c, pw]
    return o.reshape(B, Cout, 2 * H, 2 * W)


def _reference_conv_transpose(x_nhwc, weight_t, bias):
    """Direct-from-definition ConvTranspose2d reference (stride=2, pad=1, out_pad=1, k=3)."""
    B, H, W, _ = x_nhwc.shape
    Cout = weight_t.shape[1]
    buf = jnp.zeros((B, 2 * H + 2, 2 * W + 2, Cout), jnp.float32)
    for kh in range(3):
        for kw in range(3):
            contrib = jnp.einsum('bhwc,co->bhwo', x_nhwc, weight_t[:, :, kh, kw])
            buf = buf.at[:, kh:kh + 2 * H:2, kw:kw + 2 * W:2, :].add(contrib)
    out = buf[:, 1:2 * H + 1, 1:2 * W + 1, :] + bias
    return jnp.transpose(out, (0, 3, 1, 2))


if __name__ == "__main__":
    # Small config consistent with the module: embed_dim=32, in_chans=4, input_resolution=(16,16)
    B, H, W = 2, 16, 16
    embed_dim, in_chans = 32, 4
    key = jax.random.PRNGKey(0)
    kx, kw, kb = jax.random.split(key, 3)

    x = jax.random.normal(kx, (B, H * W, embed_dim), dtype=jnp.float32)
    # ConvTranspose2d weight layout: (in_channels=embed_dim, out_channels=in_chans, 3, 3)
    weight_t = jax.random.normal(kw, (embed_dim, in_chans, 3, 3), dtype=jnp.float32) * 0.1
    bias = jax.random.normal(kb, (in_chans,), dtype=jnp.float32) * 0.1

    out = patch_inflated_forward(x, weight_t, bias, (H, W), in_chans)
    out = jax.block_until_ready(out)
    assert out.shape == (B, in_chans, 2 * H, 2 * W), out.shape

    ref = _reference_conv_transpose(x.reshape(B, H, W, embed_dim), weight_t, bias)
    ref = jax.block_until_ready(ref)
    err = float(jnp.max(jnp.abs(out - ref)))
    assert jnp.allclose(out, ref, atol=2e-4, rtol=2e-4), err

    print("KERNEL_OK")
</pallas_src>

<mosaic_0001>
module attributes {stable_mosaic.version = 11 : i64} {
  func.func @_patch_inflated_kernel(%arg0: i32, %arg1: i32, %arg2: memref<1x128x32xf32, #tpu.memory_space<vmem>>, %arg3: memref<1x16x32xf32, #tpu.memory_space<vmem>>, %arg4: memref<128x16xf32, #tpu.memory_space<vmem>>, %arg5: memref<16x1xf32, #tpu.memory_space<vmem>>, %arg6: memref<1x1x16x128xf32, #tpu.memory_space<vmem>>) attributes {dimension_semantics = [#tpu.dimension_semantics<parallel>, #tpu.dimension_semantics<parallel>], iteration_bounds = array<i64: 2, 2>, scalar_prefetch = 0 : i64, scratch_operands = 0 : i64, tpu.core_type = #tpu.core_type<tc>, window_params = [{transform_indices = @transform_0, window_bounds = array<i64: 1, 128, 32>}, {transform_indices = @transform_1, window_bounds = array<i64: 1, 16, 32>}, {pipeline_mode = #tpu.pipeline_mode<synchronous>, transform_indices = @transform_2, window_bounds = array<i64: 128, 16>}, {pipeline_mode = #tpu.pipeline_mode<synchronous>, transform_indices = @transform_3, window_bounds = array<i64: 16, 1>}, {transform_indices = @transform_4, window_bounds = array<i64: 1, 1, 16, 128>}]} {
    %c0 = arith.constant 0 : index
    %c0_0 = arith.constant 0 : index
    %c0_1 = arith.constant 0 : index
    %0 = vector.load %arg2[%c0, %c0_0, %c0_1] : memref<1x128x32xf32, #tpu.memory_space<vmem>>, vector<1x128x32xf32>
    %1 = vector.shape_cast %0 : vector<1x128x32xf32> to vector<128x32xf32>
    %c0_2 = arith.constant 0 : index
    %c0_3 = arith.constant 0 : index
    %c0_4 = arith.constant 0 : index
    %2 = vector.load %arg3[%c0_2, %c0_3, %c0_4] : memref<1x16x32xf32, #tpu.memory_space<vmem>>, vector<1x16x32xf32>
    %3 = vector.shape_cast %2 : vector<1x16x32xf32> to vector<16x32xf32>
    %c1_i32 = arith.constant 1 : i32
    %4 = arith.cmpi slt, %arg1, %c1_i32 : i32
    %5 = arith.extui %4 : i1 to i32
    %6 = arith.sitofp %5 : i32 to f32
    %7 = vector.broadcast %6 : f32 to vector<16x32xf32>
    %8 = arith.mulf %3, %7 : vector<16x32xf32>
    %cst = arith.constant 0.000000e+00 : f32
    %9 = vector.broadcast %cst : f32 to vector<1x32xf32>
    %10 = tpu.concatenate %1, %8, %9 in 0 : vector<128x32xf32>, vector<16x32xf32>, vector<1x32xf32> -> vector<145x32xf32>
    %11 = vector.extract_strided_slice %10 {offsets = [0, 0], sizes = [128, 32], strides = [1, 1]} : vector<145x32xf32> to vector<128x32xf32>
    %12 = vector.extract_strided_slice %10 {offsets = [1, 0], sizes = [128, 32], strides = [1, 1]} : vector<145x32xf32> to vector<128x32xf32>
    %13 = vector.extract_strided_slice %10 {offsets = [16, 0], sizes = [128, 32], strides = [1, 1]} : vector<145x32xf32> to vector<128x32xf32>
    %14 = vector.extract_strided_slice %10 {offsets = [17, 0], sizes = [128, 32], strides = [1, 1]} : vector<145x32xf32> to vector<128x32xf32>
    %15 = tpu.iota {dimensions = array<i32: 0>} : vector<128x32xi32>
    %c16_i32 = arith.constant 16 : i32
    %c0_i32 = arith.constant 0 : i32
    %16 = arith.cmpi eq, %c16_i32, %c0_i32 : i32
    %c1_i32_5 = arith.constant 1 : i32
    %17 = arith.select %16, %c1_i32_5, %c16_i32 : i32
    %18 = vector.broadcast %17 : i32 to vector<128x32xi32>
    %19 = arith.remsi %15, %18 : vector<128x32xi32>
    %c0_i32_6 = arith.constant 0 : i32
    %20 = vector.broadcast %c0_i32_6 : i32 to vector<128x32xi32>
    %21 = arith.cmpi ne, %19, %20 : vector<128x32xi32>
    %c0_i32_7 = arith.constant 0 : i32
    %22 = vector.broadcast %c0_i32_7 : i32 to vector<128x32xi32>
    %23 = arith.cmpi slt, %19, %22 : vector<128x32xi32>
    %c0_i32_8 = arith.constant 0 : i32
    %24 = arith.cmpi slt, %17, %c0_i32_8 : i32
    %25 = vector.broadcast %24 : i1 to vector<128x32xi1>
    %26 = vector.broadcast %25 : vector<128x32xi1> to vector<128x32xi1>
    %27 = arith.xori %23, %26 : vector<128x32xi1>
    %28 = arith.andi %27, %21 : vector<128x32xi1>
    %29 = vector.broadcast %17 : i32 to vector<128x32xi32>
    %30 = arith.addi %19, %29 : vector<128x32xi32>
    %31 = arith.select %28, %30, %19 : vector<128x32xi1>, vector<128x32xi32>
    %c15_i32 = arith.constant 15 : i32
    %32 = vector.broadcast %c15_i32 : i32 to vector<128x32xi32>
    %33 = arith.cmpi slt, %31, %32 : vector<128x32xi32>
    %cst_9 = arith.constant 0.000000e+00 : f32
    %34 = vector.broadcast %cst_9 : f32 to vector<128x32xf32>
    %35 = arith.select %33, %12, %34 : vector<128x32xi1>, vector<128x32xf32>
    %cst_10 = arith.constant 0.000000e+00 : f32
    %36 = vector.broadcast %cst_10 : f32 to vector<128x32xf32>
    %37 = arith.select %33, %14, %36 : vector<128x32xi1>, vector<128x32xf32>
    %38 = tpu.concatenate %11, %35, %13, %37 in 1 : vector<128x32xf32>, vector<128x32xf32>, vector<128x32xf32>, vector<128x32xf32> -> vector<128x128xf32>
    %c0_11 = arith.constant 0 : index
    %c0_12 = arith.constant 0 : index
    %39 = vector.load %arg4[%c0_11, %c0_12] : memref<128x16xf32, #tpu.memory_space<vmem>>, vector<128x16xf32>
    %cst_13 = arith.constant dense<0.000000e+00> : vector<128x16xf32>
    %40 = tpu.matmul %38, %39, %cst_13 {dimension_numbers = #tpu.dot_dimension_numbers<[1], [0], [0], [1], [0, 0, 1, 1], [], []>} : vector<128x128xf32>, vector<128x16xf32>, vector<128x16xf32> -> vector<128x16xf32>
    %41 = tpu.transpose %40, [1, 0] : vector<128x16xf32> -> vector<16x128xf32>
    %c0_14 = arith.constant 0 : index
    %c0_15 = arith.constant 0 : index
    %42 = vector.load %arg5[%c0_14, %c0_15] : memref<16x1xf32, #tpu.memory_space<vmem>>, vector<16x1xf32>
    %43 = vector.broadcast %42 : vector<16x1xf32> to vector<16x128xf32>
    %44 = arith.addf %41, %43 : vector<16x128xf32>
    %c0_16 = arith.constant 0 : index
    %c0_17 = arith.constant 0 : index
    %c0_18 = arith.constant 0 : index
    %c0_19 = arith.constant 0 : index
    %45 = vector.load %arg6[%c0_16, %c0_17, %c0_18, %c0_19] : memref<1x1x16x128xf32, #tpu.memory_space<vmem>>, vector<1x1x16x128xf32>
    %46 = vector.shape_cast %45 : vector<1x1x16x128xf32> to vector<16x128xf32>
    %47 = vector.shape_cast %44 : vector<16x128xf32> to vector<1x1x16x128xf32>
    tpu.vector_store %arg6[%c0_16, %c0_17, %c0_18, %c0_19], %47 {strides = array<i32>} : memref<1x1x16x128xf32, #tpu.memory_space<vmem>>, vector<1x1x16x128xf32>,
    return
  }
  func.func @transform_0(%arg0: i32, %arg1: i32) -> (i32, i32, i32) {
    %c0_i32 = arith.constant 0 : i32
    %c0_i32_0 = arith.constant 0 : i32
    return %arg0, %arg1, %c0_i32 : i32, i32, i32
  }
  func.func @transform_1(%arg0: i32, %arg1: i32) -> (i32, i32, i32) {
    %c1_i32 = arith.constant 1 : i32
    %0 = arith.addi %arg1, %c1_i32 : i32
    %c8_i32 = arith.constant 8 : i32
    %1 = arith.muli %0, %c8_i32 : i32
    %c15_i32 = arith.constant 15 : i32
    %2 = arith.minsi %1, %c15_i32 : i32
    %c0_i32 = arith.constant 0 : i32
    %c0_i32_0 = arith.constant 0 : i32
    return %arg0, %2, %c0_i32 : i32, i32, i32
  }
  func.func @transform_2(%arg0: i32, %arg1: i32) -> (i32, i32) {
    %c0_i32 = arith.constant 0 : i32
    %c0_i32_0 = arith.constant 0 : i32
    %c0_i32_1 = arith.constant 0 : i32
    return %c0_i32, %c0_i32_0 : i32, i32
  }
  func.func @transform_3(%arg0: i32, %arg1: i32) -> (i32, i32) {
    %c0_i32 = arith.constant 0 : i32
    %c0_i32_0 = arith.constant 0 : i32
    %c0_i32_1 = arith.constant 0 : i32
    return %c0_i32, %c0_i32_0 : i32, i32
  }
  func.func @transform_4(%arg0: i32, %arg1: i32) -> (i32, i32, i32, i32) {
    %c0_i32 = arith.constant 0 : i32
    %c0_i32_0 = arith.constant 0 : i32
    %c0_i32_1 = arith.constant 0 : i32
    return %arg0, %arg1, %c0_i32, %c0_i32_0 : i32, i32, i32, i32
  }
}

</mosaic_0001>

<llo_original>
// kernel: tpu_custom_call.1
$region0: #{tpu_custom_call.1}
  #allocation0 [shape = 'u32[]', space=smem, size = 0x4, offset = 0x4, fixed_abs, tag = 'smem constant byte address 0x4 - core index']
  #allocation1 [shape = 'u32[144,128]{1,0:T(1,128)}', space=vmem, size = 0x12000, scoped, tag = 'internal scratch']
  %s0 = inlined_call_operand.vmem [shape: f32[2,256,32], index: 0, kind: input, shape index: {}]
  %s1 = inlined_call_operand.vmem [shape: f32[2,256,32], index: 1, kind: input, shape index: {}]
  %s2 = inlined_call_operand.vmem [shape: f32[128,16], index: 2, kind: input, shape index: {}]
  %s3 = inlined_call_operand.vmem [shape: f32[16,1], index: 3, kind: input, shape index: {}]
  %s4 = inlined_call_operand.hbm [shape: f32[2,2,16,128], index: 4, kind: output, shape index: {}]
  %s5 = sld [smem:[#allocation0]]
  $region49: #{tpu_custom_call.1} parent=0
    _
  %s7 = ssub.s32 1, %s5
  %s8 = scalar_select 0, %s7, %s5
  $region1: #{tpu_custom_call.1} parent=0
    #allocation2 [shape = 'u8[16384]{0}', space=vmem, size = 0x4000, scoped, tag = 'output window, operand 0']
    #allocation3 [shape = 's32[2]{0}', space=sflag, size = 0x8, scoped, tag = 'scoped memory for tpu_custom_call.1']
    %9 = vsyncpa [#allocation3], 0
    %s10 = scalar_lea.sflag [#allocation3], 1
    %11 = vsyncpa %s10, 0
    loop: start=0, step=1, limit=6
    $region2: #{tpu_custom_call.1} parent=1 // loop_pre_header
      _
    $region3: #{tpu_custom_call.1} parent=1 // loop_header
      %s13 = sphi 0, %s17
      %p14 = scmp.ge.s32.totalorder %s13, 6
      %s20 = sphi 0, %s32
      %s21 = sphi 0, %s28
      %s22 = sphi 0, %s20
      %s23 = sphi 0, %s21
      %s24 = sphi 0, %s22
      %s25 = sphi 0, %s23
      %s37 = sphi 0, %s39
      %s40 = sphi 0, %s37
      %s41 = sphi 0, %s40
      %s57 = sphi 0, %s41
      %s73 = sphi 0, %s75
      %s76 = sphi 0, %s73
      %s77 = sphi 0, %s76
      %s93 = sphi 0, %s77
      %s97 = sphi 0, %s97
      %s99 = sphi 0, %s97
      %s100 = sphi 0, %s99
      %s114 = sphi 0, %s100
      %s118 = sphi 0, %s118
      %s120 = sphi 0, %s118
      %s121 = sphi 0, %s120
      %s135 = sphi 0, %s121
      %s143 = sphi 0, %s145
      %s146 = sphi 0, %s143
      %s147 = sphi 0, %s146
      %s163 = sphi 0, %s147
    $region4: #{tpu_custom_call.1} parent=1 // loop_header_branch
      %16 = sbr.rel (%p14) target = $region8
    $region5: #{tpu_custom_call.1} parent=1 // loop_body
      %s18 = ssub.s32 %s13, 1
      %s19 = ssub.s32 %s13, 2
      %s26 = sadd.s32 1, %s21
      %p27 = scmp.ge.s32.totalorder %s26, 2
      %s28 = scalar_select %p27, 0, %s26
      %s29 = sadd.s32 1, %s20
      %s30 = scalar_select %p27, %s29, %s20
      %p31 = scmp.ge.s32.totalorder %s30, 2
      %s32 = scalar_select %p31, 0, %s30
      %s33 = ssub.s32 %s20, %s32
      %s34 = ssub.s32 %s21, %s28
      %s35 = sor.u32 %s33, %s34
      %p36 = scmp.eq.s32.totalorder %s35, 0
      %s38 = sadd.s32 %s37, 1
      %s39 = scalar_select %p36, %s37, %s38
      %p42 = pneg %p36
      %p43 = scmp.eq.s32.totalorder %s13, 3
      %p44 = por %p42, %p43
      %p45 = scmp.ne.s32.totalorder %s37, %s40
      %p46 = scmp.eq.s32.totalorder %s13, 0
      %p47 = por %p45, %p46
      %p48 = scmp.ne.s32.totalorder %s37, %s40
      %p49 = scmp.eq.s32.totalorder %s18, 3
      %p50 = por %p48, %p49
      %p51 = scmp.ne.s32.totalorder %s40, %s41
      %p52 = scmp.eq.s32.totalorder %s18, 0
      %p53 = por %p51, %p52
      %p54 = scmp.ne.s32.totalorder %s40, %s41
      %p55 = scmp.eq.s32.totalorder %s19, 3
      %p56 = por %p54, %p55
      %p58 = scmp.ne.s32.totalorder %s41, %s57
      %p59 = scmp.eq.s32.totalorder %s19, 0
      %p60 = por %p58, %p59
      %s61 = sadd.s32 %s21, 1
      %s62 = smul.u32 %s61, 8
      %p63 = scmp.lt.s32.totalorder %s62, 15
      %s64 = scalar_select %p63, %s62, 15
      %s65 = sadd.s32 %s28, 1
      %s66 = smul.u32 %s65, 8
      %p67 = scmp.lt.s32.totalorder %s66, 15
      %s68 = scalar_select %p67, %s66, 15
      %s69 = ssub.s32 %s20, %s32
      %s70 = ssub.s32 %s64, %s68
      %s71 = sor.u32 %s69, %s70
      %p72 = scmp.eq.s32.totalorder %s71, 0
      %s74 = sadd.s32 %s73, 1
      %s75 = scalar_select %p72, %s73, %s74
      %p78 = pneg %p72
      %p79 = scmp.eq.s32.totalorder %s13, 3
      %p80 = por %p78, %p79
      %p81 = scmp.ne.s32.totalorder %s73, %s76
      %p82 = scmp.eq.s32.totalorder %s13, 0
      %p83 = por %p81, %p82
      %p84 = scmp.ne.s32.totalorder %s73, %s76
      %p85 = scmp.eq.s32.totalorder %s18, 3
      %p86 = por %p84, %p85
      %p87 = scmp.ne.s32.totalorder %s76, %s77
      %p88 = scmp.eq.s32.totalorder %s18, 0
      %p89 = por %p87, %p88
      %p90 = scmp.ne.s32.totalorder %s76, %s77
      %p91 = scmp.eq.s32.totalorder %s19, 3
      %p92 = por %p90, %p91
      %p94 = scmp.ne.s32.totalorder %s77, %s93
      %p95 = scmp.eq.s32.totalorder %s19, 0
      %p96 = por %p94, %p95
      %s98 = sadd.s32 %s97, 1
      %p101 = scmp.eq.s32.totalorder %s13, 3
      %p102 = scmp.ne.s32.totalorder %s97, %s99
      %p103 = scmp.eq.s32.totalorder %s13, 0
      %p104 = por %p102, %p103
      %p105 = scmp.ne.s32.totalorder %s97, %s99
      %p106 = scmp.eq.s32.totalorder %s18, 3
      %p107 = por %p105, %p106
      %p108 = scmp.ne.s32.totalorder %s99, %s100
      %p109 = scmp.eq.s32.totalorder %s18, 0
      %p110 = por %p108, %p109
      %p111 = scmp.ne.s32.totalorder %s99, %s100
      %p112 = scmp.eq.s32.totalorder %s19, 3
      %p113 = por %p111, %p112
      %p115 = scmp.ne.s32.totalorder %s100, %s114
      %p116 = scmp.eq.s32.totalorder %s19, 0
      %p117 = por %p115, %p116
      %s119 = sadd.s32 %s118, 1
      %p122 = scmp.eq.s32.totalorder %s13, 3
      %p123 = scmp.ne.s32.totalorder %s118, %s120
      %p124 = scmp.eq.s32.totalorder %s13, 0
      %p125 = por %p123, %p124
      %p126 = scmp.ne.s32.totalorder %s118, %s120
      %p127 = scmp.eq.s32.totalorder %s18, 3
      %p128 = por %p126, %p127
      %p129 = scmp.ne.s32.totalorder %s120, %s121
      %p130 = scmp.eq.s32.totalorder %s18, 0
      %p131 = por %p129, %p130
      %p132 = scmp.ne.s32.totalorder %s120, %s121
      %p133 = scmp.eq.s32.totalorder %s19, 3
      %p134 = por %p132, %p133
      %p136 = scmp.ne.s32.totalorder %s121, %s135
      %p137 = scmp.eq.s32.totalorder %s19, 0
      %p138 = por %p136, %p137
      %s139 = ssub.s32 %s20, %s32
      %s140 = ssub.s32 %s21, %s28
      %s141 = sor.u32 %s139, %s140
      %p142 = scmp.eq.s32.totalorder %s141, 0
      %s144 = sadd.s32 %s143, 1
      %s145 = scalar_select %p142, %s143, %s144
      %p148 = pneg %p142
      %p149 = scmp.eq.s32.totalorder %s13, 3
      %p150 = por %p148, %p149
      %p151 = scmp.ne.s32.totalorder %s143, %s146
      %p152 = scmp.eq.s32.totalorder %s13, 0
      %p153 = por %p151, %p152
      %p154 = scmp.ne.s32.totalorder %s143, %s146
      %p155 = scmp.eq.s32.totalorder %s18, 3
      %p156 = por %p154, %p155
      %p157 = scmp.ne.s32.totalorder %s146, %s147
      %p158 = scmp.eq.s32.totalorder %s18, 0
      %p159 = por %p157, %p158
      %p160 = scmp.ne.s32.totalorder %s146, %s147
      %p161 = scmp.eq.s32.totalorder %s19, 3
      %p162 = por %p160, %p161
      %p164 = scmp.ne.s32.totalorder %s147, %s163
      %p165 = scmp.eq.s32.totalorder %s19, 0
      %p166 = por %p164, %p165
      %p167 = scmp.le.s32.totalorder 1, %s13
      %p168 = scmp.lt.s32.totalorder %s13, 5
      %p169 = pnand %p167, %p168
      %p170 = pneg %p169
      // Predicated region
      $region9: #{tpu_custom_call.1} parent=5 // pred_check
        _
      $region10: #{tpu_custom_call.1} parent=5 // pred_check_branch
        %172 = sbr.rel (%p169) target = $region12
      $region11: #{tpu_custom_call.1} parent=5 // pred_region
        %s173 = ssub.s32 %s13, 1
        // Predicated region
        $region13: #{tpu_custom_call.1} parent=11 // pred_check
          %p174 = pneg %p110
        $region14: #{tpu_custom_call.1} parent=11 // pred_check_branch
          %176 = sbr.rel (%p174) target = $region16
        $region15: #{tpu_custom_call.1} parent=11 // pred_region
          _
        $region16: #{tpu_custom_call.1} parent=11 // pred_fallthru
          _
        // Predicated region
        $region17: #{tpu_custom_call.1} parent=11 // pred_check
          %p177 = pneg %p131
        $region18: #{tpu_custom_call.1} parent=11 // pred_check_branch
          %179 = sbr.rel (%p177) target = $region20
        $region19: #{tpu_custom_call.1} parent=11 // pred_region
          _
        $region20: #{tpu_custom_call.1} parent=11 // pred_fallthru
          _
      $region12: #{tpu_custom_call.1} parent=5 // pred_fallthru
        _
      %p180 = scmp.lt.s32.totalorder %s13, 4
      // Predicated region
      $region21: #{tpu_custom_call.1} parent=5 // pred_check
        %p181 = pneg %p180
      $region22: #{tpu_custom_call.1} parent=5 // pred_check_branch
        %183 = sbr.rel (%p181) target = $region24
      $region23: #{tpu_custom_call.1} parent=5 // pred_region
        // Predicated region
        $region25: #{tpu_custom_call.1} parent=23 // pred_check
          %p184 = pneg %p47
        $region26: #{tpu_custom_call.1} parent=23 // pred_check_branch
          %186 = sbr.rel (%p184) target = $region28
        $region27: #{tpu_custom_call.1} parent=23 // pred_region
          %s187 = smul.u32 16, %s21
          %p188 = scmp.lt.s32.totalorder %s20, 1
          %s189 = scalar_select %p188, %s20, 1
          %p190 = scmp.lt.s32.totalorder %s187, 31
          %s191 = scalar_select %p190, %s187, 31
          %s192 = smul.addr %s189, 32
          %s193 = sadd.s32 %s191, %s192
          %s194 = smul.addr %s193, 8
          %s195 = scalar_lea.vmem %s0, %s194
          %s196 = smul.u32 16, %s21
        $region28: #{tpu_custom_call.1} parent=23 // pred_fallthru
          _
        // Predicated region
        $region29: #{tpu_custom_call.1} parent=23 // pred_check
          %p197 = pneg %p83
        $region30: #{tpu_custom_call.1} parent=23 // pred_check_branch
          %199 = sbr.rel (%p197) target = $region32
        $region31: #{tpu_custom_call.1} parent=23 // pred_region
          %s200 = sadd.s32 %s21, 1
          %s201 = smul.u32 %s200, 8
          %p202 = scmp.lt.s32.totalorder %s201, 15
          %s203 = scalar_select %p202, %s201, 15
          %s204 = smul.u32 2, %s203
          %p205 = scmp.lt.s32.totalorder %s20, 1
          %s206 = scalar_select %p205, %s20, 1
          %p207 = scmp.lt.s32.totalorder %s204, 31
          %s208 = scalar_select %p207, %s204, 31
          %s209 = smul.addr %s206, 32
          %s210 = sadd.s32 %s208, %s209
          %s211 = smul.addr %s210, 8
          %s212 = scalar_lea.vmem %s1, %s211
          %s213 = sadd.s32 %s21, 1
          %s214 = smul.u32 %s213, 8
          %p215 = scmp.lt.s32.totalorder %s214, 15
          %s216 = scalar_select %p215, %s214, 15
          %s217 = smul.u32 2, %s216
        $region32: #{tpu_custom_call.1} parent=23 // pred_fallthru
          _
      $region24: #{tpu_custom_call.1} parent=5 // pred_fallthru
        _
      %p218 = scmp.le.s32.totalorder 1, %s13
      %p219 = scmp.lt.s32.totalorder %s13, 5
      %p220 = pnand %p218, %p219
      %p221 = pneg %p220
      // Predicated region
      $region33: #{tpu_custom_call.1} parent=5 // pred_check
        _
      $region34: #{tpu_custom_call.1} parent=5 // pred_check_branch
        %223 = sbr.rel (%p220) target = $region36
      $region35: #{tpu_custom_call.1} parent=5 // pred_region
        %s224 = ssub.s32 %s13, 1
        %s225 = smul.u32 16, %s23
        %p226 = scmp.lt.s32.totalorder %s22, 1
        %s227 = scalar_select %p226, %s22, 1
        %p228 = scmp.lt.s32.totalorder %s225, 31
        %s229 = scalar_select %p228, %s225, 31
        %s230 = smul.addr %s227, 32
        %s231 = sadd.s32 %s229, %s230
        %s232 = smul.addr %s231, 8
        %s233 = scalar_lea.vmem %s0, %s232
        %p234 = pneg %p53
        %p235 = pneg %p50
        %s236 = sadd.s32 %s23, 1
        %s237 = smul.u32 %s236, 8
        %p238 = scmp.lt.s32.totalorder %s237, 15
        %s239 = scalar_select %p238, %s237, 15
        %s240 = smul.u32 2, %s239
        %p241 = scmp.lt.s32.totalorder %s22, 1
        %s242 = scalar_select %p241, %s22, 1
        %p243 = scmp.lt.s32.totalorder %s240, 31
        %s244 = scalar_select %p243, %s240, 31
        %s245 = smul.addr %s242, 32
        %s246 = sadd.s32 %s244, %s245
        %s247 = smul.addr %s246, 8
        %s248 = scalar_lea.vmem %s1, %s247
        %p249 = pneg %p89
        %p250 = pneg %p86
        %p251 = pneg %p110
        %p252 = pneg %p107
        %p253 = pneg %p131
        %p254 = pneg %p128
        %p255 = pneg %p159
        %p256 = pneg %p156
        %s257 = sand.u32 %s146, 1
        %s258 = scalar_lea.sflag [#allocation3], %s257
        %s259 = sand.u32 %s146, 1
        %s260 = smul.addr %s259, 16
        %s261 = scalar_lea.vmem [#allocation2], %s260
        %s262 = smul.u32 16, %s23
        %p263 = scmp.lt.s32.totalorder %s22, 1
        %s264 = scalar_select %p263, %s22, 1
        %p265 = scmp.lt.s32.totalorder %s262, 31
        %s266 = scalar_select %p265, %s262, 31
        %s267 = smul.addr %s264, 32
        %s268 = sadd.s32 %s266, %s267
        %s269 = smul.addr %s268, 8
        %s270 = scalar_lea.vmem %s0, %s269
        %s271 = smul.u32 16, %s23
        %s272 = sadd.s32 %s23, 1
        %s273 = smul.u32 %s272, 8
        %p274 = scmp.lt.s32.totalorder %s273, 15
        %s275 = scalar_select %p274, %s273, 15
        %s276 = smul.u32 2, %s275
        %p277 = scmp.lt.s32.totalorder %s22, 1
        %s278 = scalar_select %p277, %s22, 1
        %p279 = scmp.lt.s32.totalorder %s276, 31
        %s280 = scalar_select %p279, %s276, 31
        %s281 = smul.addr %s278, 32
        %s282 = sadd.s32 %s280, %s281
        %s283 = smul.addr %s282, 8
        %s284 = scalar_lea.vmem %s1, %s283
        %s285 = sadd.s32 %s23, 1
        %s286 = smul.u32 %s285, 8
        %p287 = scmp.lt.s32.totalorder %s286, 15
        %s288 = scalar_select %p287, %s286, 15
        %s289 = smul.u32 2, %s288
        %v290 = vld [vmem:[%s270] sm:$0xff]
        %v291 = vld [vmem:[%s270 + $0x8] sm:$0xff]
        %v292 = vld [vmem:[%s270 + $0x10] sm:$0xff]
        %v293 = vld [vmem:[%s270 + $0x18] sm:$0xff]
        %v294 = vld [vmem:[%s270 + $0x20] sm:$0xff]
        %v295 = vld [vmem:[%s270 + $0x28] sm:$0xff]
        %v296 = vld [vmem:[%s270 + $0x30] sm:$0xff]
        %v297 = vld [vmem:[%s270 + $0x38] sm:$0xff]
        %v298 = vld [vmem:[%s270 + $0x40] sm:$0xff]
        %v299 = vld [vmem:[%s270 + $0x48] sm:$0xff]
        %v300 = vld [vmem:[%s270 + $0x50] sm:$0xff]
        %v301 = vld [vmem:[%s270 + $0x58] sm:$0xff]
        %v302 = vld [vmem:[%s270 + $0x60] sm:$0xff]
        %v303 = vld [vmem:[%s270 + $0x68] sm:$0xff]
        %v304 = vld [vmem:[%s270 + $0x70] sm:$0xff]
        %v305 = vld [vmem:[%s270 + $0x78] sm:$0xff]
        %v306 = vld [vmem:[%s284] sm:$0xff]
        %v307 = vld [vmem:[%s284 + $0x8] sm:$0xff]
        %p308 = scmp.lt.s32.totalorder %s23, 1
        %s309 = scalar_select %p308, 1, 0
        %s310 = scvt.s32.f32 %s309
        %v311 = vstv %s310
        %v312 = vmul.f32 %v306, %v311
        %v313 = vmul.f32 %v307, %v311
        %v314 = vlaneseq
        %v315 = vshrl.u32 %v314, 7
        %v316 = vadd.s32 %v315, 8
        %v317 = vadd.s32 %v315, 16
        %v318 = vadd.s32 %v315, 24
        %v319 = vadd.s32 %v315, 32
        %v320 = vadd.s32 %v315, 40
        %v321 = vadd.s32 %v315, 48
        %v322 = vadd.s32 %v315, 56
        %v323 = vadd.s32 %v315, 64
        %v324 = vadd.s32 %v315, 72
        %v325 = vadd.s32 %v315, 80
        %v326 = vadd.s32 %v315, 88
        %v327 = vadd.s32 %v315, 96
        %v328 = vadd.s32 %v315, 104
        %v329 = vadd.s32 %v315, 112
        %v330 = vadd.s32 %v315, 120
        %vm331 = vcmp.lt.s32.totalorder %v315, 0
        %v332 = vsub.s32 0, %v315
        %v333 = vsel %vm331, %v332, %v315
        %v334 = vshrl.u32 %v333, 4
        %v335 = vand.u32 %v333, 15
        %v336 = vsub.s32 0, %v335
        %v337 = vsel %vm331, %v336, %v335
        %vm338 = vcmp.lt.s32.totalorder %v316, 0
        %v339 = vsub.s32 0, %v316
        %v340 = vsel %vm338, %v339, %v316
        %v341 = vshrl.u32 %v340, 4
        %v342 = vand.u32 %v340, 15
        %v343 = vsub.s32 0, %v342
        %v344 = vsel %vm338, %v343, %v342
        %vm345 = vcmp.lt.s32.totalorder %v317, 0
        %v346 = vsub.s32 0, %v317
        %v347 = vsel %vm345, %v346, %v317
        %v348 = vshrl.u32 %v347, 4
        %v349 = vand.u32 %v347, 15
        %v350 = vsub.s32 0, %v349
        %v351 = vsel %vm345, %v350, %v349
        %vm352 = vcmp.lt.s32.totalorder %v318, 0
        %v353 = vsub.s32 0, %v318
        %v354 = vsel %vm352, %v353, %v318
        %v355 = vshrl.u32 %v354, 4
        %v356 = vand.u32 %v354, 15
        %v357 = vsub.s32 0, %v356
        %v358 = vsel %vm352, %v357, %v356
        %vm359 = vcmp.lt.s32.totalorder %v319, 0
        %v360 = vsub.s32 0, %v319
        %v361 = vsel %vm359, %v360, %v319
        %v362 = vshrl.u32 %v361, 4
        %v363 = vand.u32 %v361, 15
        %v364 = vsub.s32 0, %v363
        %v365 = vsel %vm359, %v364, %v363
        %vm366 = vcmp.lt.s32.totalorder %v320, 0
        %v367 = vsub.s32 0, %v320
        %v368 = vsel %vm366, %v367, %v320
        %v369 = vshrl.u32 %v368, 4
        %v370 = vand.u32 %v368, 15
        %v371 = vsub.s32 0, %v370
        %v372 = vsel %vm366, %v371, %v370
        %vm373 = vcmp.lt.s32.totalorder %v321, 0
        %v374 = vsub.s32 0, %v321
        %v375 = vsel %vm373, %v374, %v321
        %v376 = vshrl.u32 %v375, 4
        %v377 = vand.u32 %v375, 15
        %v378 = vsub.s32 0, %v377
        %v379 = vsel %vm373, %v378, %v377
        %vm380 = vcmp.lt.s32.totalorder %v322, 0
        %v381 = vsub.s32 0, %v322
        %v382 = vsel %vm380, %v381, %v322
        %v383 = vshrl.u32 %v382, 4
        %v384 = vand.u32 %v382, 15
        %v385 = vsub.s32 0, %v384
        %v386 = vsel %vm380, %v385, %v384
        %vm387 = vcmp.lt.s32.totalorder %v323, 0
        %v388 = vsub.s32 0, %v323
        %v389 = vsel %vm387, %v388, %v323
        %v390 = vshrl.u32 %v389, 4
        %v391 = vand.u32 %v389, 15
        %v392 = vsub.s32 0, %v391
        %v393 = vsel %vm387, %v392, %v391
        %vm394 = vcmp.lt.s32.totalorder %v324, 0
        %v395 = vsub.s32 0, %v324
        %v396 = vsel %vm394, %v395, %v324
        %v397 = vshrl.u32 %v396, 4
        %v398 = vand.u32 %v396, 15
        %v399 = vsub.s32 0, %v398
        %v400 = vsel %vm394, %v399, %v398
        %vm401 = vcmp.lt.s32.totalorder %v325, 0
        %v402 = vsub.s32 0, %v325
        %v403 = vsel %vm401, %v402, %v325
        %v404 = vshrl.u32 %v403, 4
        %v405 = vand.u32 %v403, 15
        %v406 = vsub.s32 0, %v405
        %v407 = vsel %vm401, %v406, %v405
        %vm408 = vcmp.lt.s32.totalorder %v326, 0
        %v409 = vsub.s32 0, %v326
        %v410 = vsel %vm408, %v409, %v326
        %v411 = vshrl.u32 %v410, 4
        %v412 = vand.u32 %v410, 15
        %v413 = vsub.s32 0, %v412
        %v414 = vsel %vm408, %v413, %v412
        %vm415 = vcmp.lt.s32.totalorder %v327, 0
        %v416 = vsub.s32 0, %v327
        %v417 = vsel %vm415, %v416, %v327
        %v418 = vshrl.u32 %v417, 4
        %v419 = vand.u32 %v417, 15
        %v420 = vsub.s32 0, %v419
        %v421 = vsel %vm415, %v420, %v419
        %vm422 = vcmp.lt.s32.totalorder %v328, 0
        %v423 = vsub.s32 0, %v328
        %v424 = vsel %vm422, %v423, %v328
        %v425 = vshrl.u32 %v424, 4
        %v426 = vand.u32 %v424, 15
        %v427 = vsub.s32 0, %v426
        %v428 = vsel %vm422, %v427, %v426
        %vm429 = vcmp.lt.s32.totalorder %v329, 0
        %v430 = vsub.s32 0, %v329
        %v431 = vsel %vm429, %v430, %v329
        %v432 = vshrl.u32 %v431, 4
        %v433 = vand.u32 %v431, 15
        %v434 = vsub.s32 0, %v433
        %v435 = vsel %vm429, %v434, %v433
        %vm436 = vcmp.lt.s32.totalorder %v330, 0
        %v437 = vsub.s32 0, %v330
        %v438 = vsel %vm436, %v437, %v330
        %v439 = vshrl.u32 %v438, 4
        %v440 = vand.u32 %v438, 15
        %v441 = vsub.s32 0, %v440
        %v442 = vsel %vm436, %v441, %v440
        %vm443 = vcmp.ne.s32.totalorder %v337, 0
        %vm444 = vcmp.ne.s32.totalorder %v344, 0
        %vm445 = vcmp.ne.s32.totalorder %v351, 0
        %vm446 = vcmp.ne.s32.totalorder %v358, 0
        %vm447 = vcmp.ne.s32.totalorder %v365, 0
        %vm448 = vcmp.ne.s32.totalorder %v372, 0
        %vm449 = vcmp.ne.s32.totalorder %v379, 0
        %vm450 = vcmp.ne.s32.totalorder %v386, 0
        %vm451 = vcmp.ne.s32.totalorder %v393, 0
        %vm452 = vcmp.ne.s32.totalorder %v400, 0
        %vm453 = vcmp.ne.s32.totalorder %v407, 0
        %vm454 = vcmp.ne.s32.totalorder %v414, 0
        %vm455 = vcmp.ne.s32.totalorder %v421, 0
        %vm456 = vcmp.ne.s32.totalorder %v428, 0
        %vm457 = vcmp.ne.s32.totalorder %v435, 0
        %vm458 = vcmp.ne.s32.totalorder %v442, 0
        %vm459 = vcmp.lt.s32.totalorder %v337, 0
        %vm460 = vcmp.lt.s32.totalorder %v344, 0
        %vm461 = vcmp.lt.s32.totalorder %v351, 0
        %vm462 = vcmp.lt.s32.totalorder %v358, 0
        %vm463 = vcmp.lt.s32.totalorder %v365, 0
        %vm464 = vcmp.lt.s32.totalorder %v372, 0
        %vm465 = vcmp.lt.s32.totalorder %v379, 0
        %vm466 = vcmp.lt.s32.totalorder %v386, 0
        %vm467 = vcmp.lt.s32.totalorder %v393, 0
        %vm468 = vcmp.lt.s32.totalorder %v400, 0
        %vm469 = vcmp.lt.s32.totalorder %v407, 0
        %vm470 = vcmp.lt.s32.totalorder %v414, 0
        %vm471 = vcmp.lt.s32.totalorder %v421, 0
        %vm472 = vcmp.lt.s32.totalorder %v428, 0
        %vm473 = vcmp.lt.s32.totalorder %v435, 0
        %vm474 = vcmp.lt.s32.totalorder %v442, 0
        %vm475 = vmand %vm459, %vm443
        %vm476 = vmand %vm460, %vm444
        %vm477 = vmand %vm461, %vm445
        %vm478 = vmand %vm462, %vm446
        %vm479 = vmand %vm463, %vm447
        %vm480 = vmand %vm464, %vm448
        %vm481 = vmand %vm465, %vm449
        %vm482 = vmand %vm466, %vm450
        %vm483 = vmand %vm467, %vm451
        %vm484 = vmand %vm468, %vm452
        %vm485 = vmand %vm469, %vm453
        %vm486 = vmand %vm470, %vm454
        %vm487 = vmand %vm471, %vm455
        %vm488 = vmand %vm472, %vm456
        %vm489 = vmand %vm473, %vm457
        %vm490 = vmand %vm474, %vm458
        %v491 = vadd.s32 %v337, 16
        %v492 = vadd.s32 %v344, 16
        %v493 = vadd.s32 %v351, 16
        %v494 = vadd.s32 %v358, 16
        %v495 = vadd.s32 %v365, 16
        %v496 = vadd.s32 %v372, 16
        %v497 = vadd.s32 %v379, 16
        %v498 = vadd.s32 %v386, 16
        %v499 = vadd.s32 %v393, 16
        %v500 = vadd.s32 %v400, 16
        %v501 = vadd.s32 %v407, 16
        %v502 = vadd.s32 %v414, 16
        %v503 = vadd.s32 %v421, 16
        %v504 = vadd.s32 %v428, 16
        %v505 = vadd.s32 %v435, 16
        %v506 = vadd.s32 %v442, 16
        %v507 = vsel %vm475, %v491, %v337
        %v508 = vsel %vm476, %v492, %v344
        %v509 = vsel %vm477, %v493, %v351
        %v510 = vsel %vm478, %v494, %v358
        %v511 = vsel %vm479, %v495, %v365
        %v512 = vsel %vm480, %v496, %v372
        %v513 = vsel %vm481, %v497, %v379
        %v514 = vsel %vm482, %v498, %v386
        %v515 = vsel %vm483, %v499, %v393
        %v516 = vsel %vm484, %v500, %v400
        %v517 = vsel %vm485, %v501, %v407
        %v518 = vsel %vm486, %v502, %v414
        %v519 = vsel %vm487, %v503, %v421
        %v520 = vsel %vm488, %v504, %v428
        %v521 = vsel %vm489, %v505, %v435
        %v522 = vsel %vm490, %v506, %v442
        %vm523 = vcmp.lt.s32.totalorder %v507, 15
        %vm524 = vcmp.lt.s32.totalorder %v508, 15
        %vm525 = vcmp.lt.s32.totalorder %v509, 15
        %vm526 = vcmp.lt.s32.totalorder %v510, 15
        %vm527 = vcmp.lt.s32.totalorder %v511, 15
        %vm528 = vcmp.lt.s32.totalorder %v512, 15
        %vm529 = vcmp.lt.s32.totalorder %v513, 15
        %vm530 = vcmp.lt.s32.totalorder %v514, 15
        %vm531 = vcmp.lt.s32.totalorder %v515, 15
        %vm532 = vcmp.lt.s32.totalorder %v516, 15
        %vm533 = vcmp.lt.s32.totalorder %v517, 15
        %vm534 = vcmp.lt.s32.totalorder %v518, 15
        %vm535 = vcmp.lt.s32.totalorder %v519, 15
        %vm536 = vcmp.lt.s32.totalorder %v520, 15
        %vm537 = vcmp.lt.s32.totalorder %v521, 15
        %vm538 = vcmp.lt.s32.totalorder %v522, 15
        %vm556 = vcmask 1046528
        %v557 = vrot.slane %v290, 1
        %v558 = vrot.slane %v291, 1
        %v559 = vsel %vm556, %v557, %v558
        %v560 = vrot.slane %v292, 1
        %v561 = vsel %vm556, %v558, %v560
        %v562 = vrot.slane %v293, 1
        %v563 = vsel %vm556, %v560, %v562
        %v564 = vrot.slane %v294, 1
        %v565 = vsel %vm556, %v562, %v564
        %v566 = vrot.slane %v295, 1
        %v567 = vsel %vm556, %v564, %v566
        %v568 = vrot.slane %v296, 1
        %v569 = vsel %vm556, %v566, %v568
        %v570 = vrot.slane %v297, 1
        %v571 = vsel %vm556, %v568, %v570
        %v572 = vrot.slane %v298, 1
        %v573 = vsel %vm556, %v570, %v572
        %v574 = vrot.slane %v299, 1
        %v575 = vsel %vm556, %v572, %v574
        %v576 = vrot.slane %v300, 1
        %v577 = vsel %vm556, %v574, %v576
        %v578 = vrot.slane %v301, 1
        %v579 = vsel %vm556, %v576, %v578
        %v580 = vrot.slane %v302, 1
        %v581 = vsel %vm556, %v578, %v580
        %v582 = vrot.slane %v303, 1
        %v583 = vsel %vm556, %v580, %v582
        %v584 = vrot.slane %v304, 1
        %v585 = vsel %vm556, %v582, %v584
        %v586 = vrot.slane %v305, 1
        %v587 = vsel %vm556, %v584, %v586
        %v588 = vrot.slane %v312, 1
        %v589 = vsel %vm556, %v586, %v588
        %v606 = vsel %vm523, %v559, 0.0
        %v607 = vsel %vm524, %v561, 0.0
        %v608 = vsel %vm525, %v563, 0.0
        %v609 = vsel %vm526, %v565, 0.0
        %v610 = vsel %vm527, %v567, 0.0
        %v611 = vsel %vm528, %v569, 0.0
        %v612 = vsel %vm529, %v571, 0.0
        %v613 = vsel %vm530, %v573, 0.0
        %v614 = vsel %vm531, %v575, 0.0
        %v615 = vsel %vm532, %v577, 0.0
        %v616 = vsel %vm533, %v579, 0.0
        %v617 = vsel %vm534, %v581, 0.0
        %v618 = vsel %vm535, %v583, 0.0
        %v619 = vsel %vm536, %v585, 0.0
        %v620 = vsel %vm537, %v587, 0.0
        %v621 = vsel %vm538, %v589, 0.0
        %v624 = vrot.slane %v313, 1
        %v625 = vsel %vm556, %v588, %v624
        %v626 = vrot.slane 0.0, 1
        %v627 = vsel %vm556, %v624, %v626
        %v630 = vsel %vm523, %v563, 0.0
        %v631 = vsel %vm524, %v565, 0.0
        %v632 = vsel %vm525, %v567, 0.0
        %v633 = vsel %vm526, %v569, 0.0
        %v634 = vsel %vm527, %v571, 0.0
        %v635 = vsel %vm528, %v573, 0.0
        %v636 = vsel %vm529, %v575, 0.0
        %v637 = vsel %vm530, %v577, 0.0
        %v638 = vsel %vm531, %v579, 0.0
        %v639 = vsel %vm532, %v581, 0.0
        %v640 = vsel %vm533, %v583, 0.0
        %v641 = vsel %vm534, %v585, 0.0
        %v642 = vsel %vm535, %v587, 0.0
        %v643 = vsel %vm536, %v589, 0.0
        %v644 = vsel %vm537, %v625, 0.0
        %v645 = vsel %vm538, %v627, 0.0
        %662 = vrot.lane.b32.xlu0 %v606, 32
        %v663 = vpop.permute.xlu0 %662
        %664 = vrot.lane.b32.xlu0 %v607, 32
        %v665 = vpop.permute.xlu0 %664
        %666 = vrot.lane.b32.xlu0 %v608, 32
        %v667 = vpop.permute.xlu0 %666
        %668 = vrot.lane.b32.xlu0 %v609, 32
        %v669 = vpop.permute.xlu0 %668
        %670 = vrot.lane.b32.xlu0 %v610, 32
        %v671 = vpop.permute.xlu0 %670
        %672 = vrot.lane.b32.xlu0 %v611, 32
        %v673 = vpop.permute.xlu0 %672
        %674 = vrot.lane.b32.xlu0 %v612, 32
        %v675 = vpop.permute.xlu0 %674
        %676 = vrot.lane.b32.xlu0 %v613, 32
        %v677 = vpop.permute.xlu0 %676
        %678 = vrot.lane.b32.xlu0 %v614, 32
        %v679 = vpop.permute.xlu0 %678
        %680 = vrot.lane.b32.xlu0 %v615, 32
        %v681 = vpop.permute.xlu0 %680
        %682 = vrot.lane.b32.xlu0 %v616, 32
        %v683 = vpop.permute.xlu0 %682
        %684 = vrot.lane.b32.xlu0 %v617, 32
        %v685 = vpop.permute.xlu0 %684
        %686 = vrot.lane.b32.xlu0 %v618, 32
        %v687 = vpop.permute.xlu0 %686
        %688 = vrot.lane.b32.xlu0 %v619, 32
        %v689 = vpop.permute.xlu0 %688
        %690 = vrot.lane.b32.xlu0 %v620, 32
        %v691 = vpop.permute.xlu0 %690
        %692 = vrot.lane.b32.xlu0 %v621, 32
        %v693 = vpop.permute.xlu0 %692
        %710 = vrot.lane.b32.xlu0 %v292, 64
        %v711 = vpop.permute.xlu0 %710
        %712 = vrot.lane.b32.xlu0 %v293, 64
        %v713 = vpop.permute.xlu0 %712
        %714 = vrot.lane.b32.xlu0 %v294, 64
        %v715 = vpop.permute.xlu0 %714
        %716 = vrot.lane.b32.xlu0 %v295, 64
        %v717 = vpop.permute.xlu0 %716
        %718 = vrot.lane.b32.xlu0 %v296, 64
        %v719 = vpop.permute.xlu0 %718
        %720 = vrot.lane.b32.xlu0 %v297, 64
        %v721 = vpop.permute.xlu0 %720
        %722 = vrot.lane.b32.xlu0 %v298, 64
        %v723 = vpop.permute.xlu0 %722
        %724 = vrot.lane.b32.xlu0 %v299, 64
        %v725 = vpop.permute.xlu0 %724
        %726 = vrot.lane.b32.xlu0 %v300, 64
        %v727 = vpop.permute.xlu0 %726
        %728 = vrot.lane.b32.xlu0 %v301, 64
        %v729 = vpop.permute.xlu0 %728
        %730 = vrot.lane.b32.xlu0 %v302, 64
        %v731 = vpop.permute.xlu0 %730
        %732 = vrot.lane.b32.xlu0 %v303, 64
        %v733 = vpop.permute.xlu0 %732
        %734 = vrot.lane.b32.xlu0 %v304, 64
        %v735 = vpop.permute.xlu0 %734
        %736 = vrot.lane.b32.xlu0 %v305, 64
        %v737 = vpop.permute.xlu0 %736
        %738 = vrot.lane.b32.xlu0 %v312, 64
        %v739 = vpop.permute.xlu0 %738
        %740 = vrot.lane.b32.xlu0 %v313, 64
        %v741 = vpop.permute.xlu0 %740
        %774 = vrot.lane.b32.xlu0 %v630, 96
        %v775 = vpop.permute.xlu0 %774
        %776 = vrot.lane.b32.xlu0 %v631, 96
        %v777 = vpop.permute.xlu0 %776
        %778 = vrot.lane.b32.xlu0 %v632, 96
        %v779 = vpop.permute.xlu0 %778
        %780 = vrot.lane.b32.xlu0 %v633, 96
        %v781 = vpop.permute.xlu0 %780
        %782 = vrot.lane.b32.xlu0 %v634, 96
        %v783 = vpop.permute.xlu0 %782
        %784 = vrot.lane.b32.xlu0 %v635, 96
        %v785 = vpop.permute.xlu0 %784
        %786 = vrot.lane.b32.xlu0 %v636, 96
        %v787 = vpop.permute.xlu0 %786
        %788 = vrot.lane.b32.xlu0 %v637, 96
        %v789 = vpop.permute.xlu0 %788
        %790 = vrot.lane.b32.xlu0 %v638, 96
        %v791 = vpop.permute.xlu0 %790
        %792 = vrot.lane.b32.xlu0 %v639, 96
        %v793 = vpop.permute.xlu0 %792
        %794 = vrot.lane.b32.xlu0 %v640, 96
        %v795 = vpop.permute.xlu0 %794
        %796 = vrot.lane.b32.xlu0 %v641, 96
        %v797 = vpop.permute.xlu0 %796
        %798 = vrot.lane.b32.xlu0 %v642, 96
        %v799 = vpop.permute.xlu0 %798
        %800 = vrot.lane.b32.xlu0 %v643, 96
        %v801 = vpop.permute.xlu0 %800
        %802 = vrot.lane.b32.xlu0 %v644, 96
        %v803 = vpop.permute.xlu0 %802
        %804 = vrot.lane.b32.xlu0 %v645, 96
        %v805 = vpop.permute.xlu0 %804
        %vm822 = vcmask 261120
        %v823 = vsel %vm822, %v290, %v663
        %v824 = vsel %vm822, %v291, %v665
        %v825 = vsel %vm822, %v292, %v667
        %v826 = vsel %vm822, %v293, %v669
        %v827 = vsel %vm822, %v294, %v671
        %v828 = vsel %vm822, %v295, %v673
        %v829 = vsel %vm822, %v296, %v675
        %v830 = vsel %vm822, %v297, %v677
        %v831 = vsel %vm822, %v298, %v679
        %v832 = vsel %vm822, %v299, %v681
        %v833 = vsel %vm822, %v300, %v683
        %v834 = vsel %vm822, %v301, %v685
        %v835 = vsel %vm822, %v302, %v687
        %v836 = vsel %vm822, %v303, %v689
        %v837 = vsel %vm822, %v304, %v691
        %v838 = vsel %vm822, %v305, %v693
        %vm839 = vcmask 523264
        %v840 = vsel %vm839, %v823, %v711
        %v841 = vsel %vm839, %v824, %v713
        %v842 = vsel %vm839, %v825, %v715
        %v843 = vsel %vm839, %v826, %v717
        %v844 = vsel %vm839, %v827, %v719
        %v845 = vsel %vm839, %v828, %v721
        %v846 = vsel %vm839, %v829, %v723
        %v847 = vsel %vm839, %v830, %v725
        %v848 = vsel %vm839, %v831, %v727
        %v849 = vsel %vm839, %v832, %v729
        %v850 = vsel %vm839, %v833, %v731
        %v851 = vsel %vm839, %v834, %v733
        %v852 = vsel %vm839, %v835, %v735
        %v853 = vsel %vm839, %v836, %v737
        %v854 = vsel %vm839, %v837, %v739
        %v855 = vsel %vm839, %v838, %v741
        %vm856 = vcmask 785408
        %v857 = vsel %vm856, %v840, %v775
        %v858 = vsel %vm856, %v841, %v777
        %v859 = vsel %vm856, %v842, %v779
        %v860 = vsel %vm856, %v843, %v781
        %v861 = vsel %vm856, %v844, %v783
        %v862 = vsel %vm856, %v845, %v785
        %v863 = vsel %vm856, %v846, %v787
        %v864 = vsel %vm856, %v847, %v789
        %v865 = vsel %vm856, %v848, %v791
        %v866 = vsel %vm856, %v849, %v793
        %v867 = vsel %vm856, %v850, %v795
        %v868 = vsel %vm856, %v851, %v797
        %v869 = vsel %vm856, %v852, %v799
        %v870 = vsel %vm856, %v853, %v801
        %v871 = vsel %vm856, %v854, %v803
        %v872 = vsel %vm856, %v855, %v805
        %v873 = vld [vmem:[%s2] sm:$0xff]
        %v874 = vld [vmem:[%s2 + $0x8] sm:$0xff]
        %v875 = vld [vmem:[%s2 + $0x10] sm:$0xff]
        %v876 = vld [vmem:[%s2 + $0x18] sm:$0xff]
        %v877 = vld [vmem:[%s2 + $0x20] sm:$0xff]
        %v878 = vld [vmem:[%s2 + $0x28] sm:$0xff]
        %v879 = vld [vmem:[%s2 + $0x30] sm:$0xff]
        %v880 = vld [vmem:[%s2 + $0x38] sm:$0xff]
        %v881 = vld [vmem:[%s2 + $0x40] sm:$0xff]
        %v882 = vld [vmem:[%s2 + $0x48] sm:$0xff]
        %v883 = vld [vmem:[%s2 + $0x50] sm:$0xff]
        %v884 = vld [vmem:[%s2 + $0x58] sm:$0xff]
        %v885 = vld [vmem:[%s2 + $0x60] sm:$0xff]
        %v886 = vld [vmem:[%s2 + $0x68] sm:$0xff]
        %v887 = vld [vmem:[%s2 + $0x70] sm:$0xff]
        %v888 = vld [vmem:[%s2 + $0x78] sm:$0xff]
        %889 = vmatprep.subr.mxu0 0.0
        %890 = vmatpush1.msra.mxu0 %v873
        %891 = vmatprep.subr.mxu0 0.0
        %892 = vmatpush1.msra.mxu0 %v874
        %893 = vmatprep.subr.mxu0 0.0
        %894 = vmatpush1.msra.mxu0 %v875
        %895 = vmatprep.subr.mxu0 0.0
        %896 = vmatpush1.msra.mxu0 %v876
        %897 = vmatprep.subr.mxu0 0.0
        %898 = vmatpush1.msra.mxu0 %v877
        %899 = vmatprep.subr.mxu0 0.0
        %900 = vmatpush1.msra.mxu0 %v878
        %901 = vmatprep.subr.mxu0 0.0
        %902 = vmatpush1.msra.mxu0 %v879
        %903 = vmatprep.subr.mxu0 0.0
        %904 = vmatpush1.msra.mxu0 %v880
        %905 = vmatprep.subr.mxu0 0.0
        %906 = vmatpush1.msra.mxu0 %v881
        %907 = vmatprep.subr.mxu0 0.0
        %908 = vmatpush1.msra.mxu0 %v882
        %909 = vmatprep.subr.mxu0 0.0
        %910 = vmatpush1.msra.mxu0 %v883
        %911 = vmatprep.subr.mxu0 0.0
        %912 = vmatpush1.msra.mxu0 %v884
        %913 = vmatprep.subr.mxu0 0.0
        %914 = vmatpush1.msra.mxu0 %v885
        %915 = vmatprep.subr.mxu0 0.0
        %916 = vmatpush1.msra.mxu0 %v886
        %917 = vmatprep.subr.mxu0 0.0
        %918 = vmatpush1.msra.mxu0 %v887
        %919 = vmatprep.subr.mxu0 0.0
        %920 = vmatpush1.msra.mxu0 %v888
        %921 = vmatprep.subr.mxu0 0.0
        %922 = vmatpush1.msra.mxu0 0.0
        %923 = vmatprep.subr.mxu0 0.0
        %924 = vmatpush1.msra.mxu0 0.0
        %925 = vmatprep.subr.mxu0 0.0
        %926 = vmatpush1.msra.mxu0 0.0
        %927 = vmatprep.subr.mxu0 0.0
        %928 = vmatpush1.msra.mxu0 0.0
        %929 = vmatprep.subr.mxu0 0.0
        %930 = vmatpush1.msra.mxu0 0.0
        %931 = vmatprep.subr.mxu0 0.0
        %932 = vmatpush1.msra.mxu0 0.0
        %933 = vmatprep.subr.mxu0 0.0
        %934 = vmatpush1.msra.mxu0 0.0
        %935 = vmatprep.subr.mxu0 0.0
        %936 = vmatpush1.msra.mxu0 0.0
        %937 = vmatprep.subr.mxu0 0.0
        %938 = vmatpush1.msra.mxu0 0.0
        %939 = vmatprep.subr.mxu0 0.0
        %940 = vmatpush1.msra.mxu0 0.0
        %941 = vmatprep.subr.mxu0 0.0
        %942 = vmatpush1.msra.mxu0 0.0
        %943 = vmatprep.subr.mxu0 0.0
        %944 = vmatpush1.msra.mxu0 0.0
        %945 = vmatprep.subr.mxu0 0.0
        %946 = vmatpush1.msra.mxu0 0.0
        %947 = vmatprep.subr.mxu0 0.0
        %948 = vmatpush1.msra.mxu0 0.0
        %949 = vmatprep.subr.mxu0 0.0
        %950 = vmatpush1.msra.mxu0 0.0
        %951 = vmatprep.subr.mxu0 0.0
        %952 = vmatpush1.msra.mxu0 0.0
        %953 = vmatprep.mubr.f32.mxu0 0.0
        %954 = vmatmul.mubr.f32.gmra.mrb[0].mxu0 %v857
        %v955 = vpop.f32.mrb[0].mxu0
        %v956 = vadd.f32 0.0, %v955
        %v957 = vpop.f32.mrb[0].mxu0
        %958 = vmatprep.mubr.f32.mxu0 0.0
        %959 = vmatmul.mubr.f32.gmra.mrb[0].mxu0 %v858
        %v960 = vpop.f32.mrb[0].mxu0
        %v961 = vadd.f32 0.0, %v960
        %v962 = vpop.f32.mrb[0].mxu0
        %963 = vmatprep.mubr.f32.mxu0 0.0
        %964 = vmatmul.mubr.f32.gmra.mrb[0].mxu0 %v859
        %v965 = vpop.f32.mrb[0].mxu0
        %v966 = vadd.f32 0.0, %v965
        %v967 = vpop.f32.mrb[0].mxu0
        %968 = vmatprep.mubr.f32.mxu0 0.0
        %969 = vmatmul.mubr.f32.gmra.mrb[0].mxu0 %v860
        %v970 = vpop.f32.mrb[0].mxu0
        %v971 = vadd.f32 0.0, %v970
        %v972 = vpop.f32.mrb[0].mxu0
        %973 = vmatprep.mubr.f32.mxu0 0.0
        %974 = vmatmul.mubr.f32.gmra.mrb[0].mxu0 %v861
        %v975 = vpop.f32.mrb[0].mxu0
        %v976 = vadd.f32 0.0, %v975
        %v977 = vpop.f32.mrb[0].mxu0
        %978 = vmatprep.mubr.f32.mxu0 0.0
        %979 = vmatmul.mubr.f32.gmra.mrb[0].mxu0 %v862
        %v980 = vpop.f32.mrb[0].mxu0
        %v981 = vadd.f32 0.0, %v980
        %v982 = vpop.f32.mrb[0].mxu0
        %983 = vmatprep.mubr.f32.mxu0 0.0
        %984 = vmatmul.mubr.f32.gmra.mrb[0].mxu0 %v863
        %v985 = vpop.f32.mrb[0].mxu0
        %v986 = vadd.f32 0.0, %v985
        %v987 = vpop.f32.mrb[0].mxu0
        %988 = vmatprep.mubr.f32.mxu0 0.0
        %989 = vmatmul.mubr.f32.gmra.mrb[0].mxu0 %v864
        %v990 = vpop.f32.mrb[0].mxu0
        %v991 = vadd.f32 0.0, %v990
        %v992 = vpop.f32.mrb[0].mxu0
        %993 = vmatprep.mubr.f32.mxu0 0.0
        %994 = vmatmul.mubr.f32.gmra.mrb[0].mxu0 %v865
        %v995 = vpop.f32.mrb[0].mxu0
        %v996 = vadd.f32 0.0, %v995
        %v997 = vpop.f32.mrb[0].mxu0
        %998 = vmatprep.mubr.f32.mxu0 0.0
        %999 = vmatmul.mubr.f32.gmra.mrb[0].mxu0 %v866
        %v1000 = vpop.f32.mrb[0].mxu0
        %v1001 = vadd.f32 0.0, %v1000
        %v1002 = vpop.f32.mrb[0].mxu0
        %1003 = vmatprep.mubr.f32.mxu0 0.0
        %1004 = vmatmul.mubr.f32.gmra.mrb[0].mxu0 %v867
        %v1005 = vpop.f32.mrb[0].mxu0
        %v1006 = vadd.f32 0.0, %v1005
        %v1007 = vpop.f32.mrb[0].mxu0
        %1008 = vmatprep.mubr.f32.mxu0 0.0
        %1009 = vmatmul.mubr.f32.gmra.mrb[0].mxu0 %v868
        %v1010 = vpop.f32.mrb[0].mxu0
        %v1011 = vadd.f32 0.0, %v1010
        %v1012 = vpop.f32.mrb[0].mxu0
        %1013 = vmatprep.mubr.f32.mxu0 0.0
        %1014 = vmatmul.mubr.f32.gmra.mrb[0].mxu0 %v869
        %v1015 = vpop.f32.mrb[0].mxu0
        %v1016 = vadd.f32 0.0, %v1015
        %v1017 = vpop.f32.mrb[0].mxu0
        %1018 = vmatprep.mubr.f32.mxu0 0.0
        %1019 = vmatmul.mubr.f32.gmra.mrb[0].mxu0 %v870
        %v1020 = vpop.f32.mrb[0].mxu0
        %v1021 = vadd.f32 0.0, %v1020
        %v1022 = vpop.f32.mrb[0].mxu0
        %1023 = vmatprep.mubr.f32.mxu0 0.0
        %1024 = vmatmul.mubr.f32.gmra.mrb[0].mxu0 %v871
        %v1025 = vpop.f32.mrb[0].mxu0
        %v1026 = vadd.f32 0.0, %v1025
        %v1027 = vpop.f32.mrb[0].mxu0
        %1028 = vmatprep.mubr.f32.mxu0 0.0
        %1029 = vmatmul.mubr.f32.gmra.mrb[0].mxu0 %v872
        %v1030 = vpop.f32.mrb[0].mxu0
        %v1031 = vadd.f32 0.0, %v1030
        %v1032 = vpop.f32.mrb[0].mxu0
        %1033 = vdwg.mxu0
        %1034 = vxpose.xlu0.b32.start [1/16] %v956, 128
        %1035 = vxpose.xlu0.b32.cont [2/16] %v961, 128
        %1036 = vxpose.xlu0.b32.cont [3/16] %v966, 128
        %1037 = vxpose.xlu0.b32.cont [4/16] %v971, 128
        %1038 = vxpose.xlu0.b32.cont [5/16] %v976, 128
        %1039 = vxpose.xlu0.b32.cont [6/16] %v981, 128
        %1040 = vxpose.xlu0.b32.cont [7/16] %v986, 128
        %1041 = vxpose.xlu0.b32.cont [8/16] %v991, 128
        %1042 = vxpose.xlu0.b32.cont [9/16] %v996, 128
        %1043 = vxpose.xlu0.b32.cont [10/16] %v1001, 128
        %1044 = vxpose.xlu0.b32.cont [11/16] %v1006, 128
        %1045 = vxpose.xlu0.b32.cont [12/16] %v1011, 128
        %1046 = vxpose.xlu0.b32.cont [13/16] %v1016, 128
        %1047 = vxpose.xlu0.b32.cont [14/16] %v1021, 128
        %1048 = vxpose.xlu0.b32.cont [15/16] %v1026, 128
        %1049 = vxpose.xlu0.b32.end [16/16] %v1031, 128
        %v1050 = vpop.trf.xlu0
        %v1051 = vpop.trf.xlu0
        %v1052 = vpop.trf.xlu0
        %v1053 = vpop.trf.xlu0
        %v1054 = vpop.trf.xlu0
        %v1055 = vpop.trf.xlu0
        %v1056 = vpop.trf.xlu0
        %v1057 = vpop.trf.xlu0
        %v1058 = vpop.trf.xlu0
        %v1059 = vpop.trf.xlu0
        %v1060 = vpop.trf.xlu0
        %v1061 = vpop.trf.xlu0
        %v1062 = vpop.trf.xlu0
        %v1063 = vpop.trf.xlu0
        %v1064 = vpop.trf.xlu0
        %v1065 = vpop.trf.xlu0
        %v1066 = vld [vmem:[%s3] sm:$0xff]
        %v1067 = vld [vmem:[%s3 + $0x8] sm:$0xff]
        %1069 = vset.pattern.permute.xlu0 0
        %1070 = vperm.xlu0 %1069, %v1066
        %v1071 = vpop.permute.xlu0 %1070
        %1074 = vset.pattern.permute.xlu0 0
        %1075 = vperm.xlu0 %1074, %v1067
        %v1076 = vpop.permute.xlu0 %1075
        %v1078 = vadd.f32 %v1050, %v1071
        %v1079 = vadd.f32 %v1051, %v1076
        %1080 = vst [vmem:[%s261] sm:$0xff] %v1078
        %1081 = vst [vmem:[%s261 + $0x8] sm:$0xff] %v1079
        %s1082 = sand.u32 %s146, 1
        %s1083 = scalar_lea.sflag [#allocation3], %s1082
        %s1084 = sand.u32 %s146, 1
        %s1085 = smul.addr %s1084, 16
        %s1086 = scalar_lea.vmem [#allocation2], %s1085
        // Predicated region
        $region37: #{tpu_custom_call.1} parent=35 // pred_check
          %p1087 = pneg %p156
        $region38: #{tpu_custom_call.1} parent=35 // pred_check_branch
          %1089 = sbr.rel (%p1087) target = $region40
        $region39: #{tpu_custom_call.1} parent=35 // pred_region
          %s1091 = ssub.s32 256, 256
          %1092 = vsyncadd %s1083, %s1091
          %s1093 = smul.addr %s23, 2
          %s1094 = smul.addr %s22, 4
          %s1095 = sadd.s32 %s1093, %s1094
          %s1096 = smul.addr %s1095, 128
          %s1097 = scalar_lea.hbm %s4, %s1096
          %s1098 = sshll.u32 %s1086, 4
          %s1099 = int_to_ptr.vmem [resolvable:$true] %s1098
          %1104 = dma.vmem_to_hbm [thread:$0]  %s1099, 256, %s1097, %s1083, 128, 128, 8
        $region40: #{tpu_custom_call.1} parent=35 // pred_fallthru
          _
      $region36: #{tpu_custom_call.1} parent=5 // pred_fallthru
        _
      %p1105 = scmp.le.s32.totalorder 2, %s13
      // Predicated region
      $region41: #{tpu_custom_call.1} parent=5 // pred_check
        %p1106 = pneg %p1105
      $region42: #{tpu_custom_call.1} parent=5 // pred_check_branch
        %1108 = sbr.rel (%p1106) target = $region44
      $region43: #{tpu_custom_call.1} parent=5 // pred_region
        %s1109 = ssub.s32 %s13, 2
        // Predicated region
        $region45: #{tpu_custom_call.1} parent=43 // pred_check
          %p1110 = pneg %p162
        $region46: #{tpu_custom_call.1} parent=43 // pred_check_branch
          %1112 = sbr.rel (%p1110) target = $region48
        $region47: #{tpu_custom_call.1} parent=43 // pred_region
          %s1113 = sand.u32 %s147, 1
          %s1114 = scalar_lea.sflag [#allocation3], %s1113
          %s1115 = sand.u32 %s147, 1
          %s1116 = smul.addr %s1115, 16
          %s1117 = scalar_lea.vmem [#allocation2], %s1116
          %1118 = dma.done %s1114, 256
        $region48: #{tpu_custom_call.1} parent=43 // pred_fallthru
          _
      $region44: #{tpu_custom_call.1} parent=5 // pred_fallthru
        _
    $region6: #{tpu_custom_call.1} parent=1 // loop_footer
      %s17 = sadd.s32 1, %s13
    $region7: #{tpu_custom_call.1} parent=1 // loop_footer_branch
      %12 = sbr.rel target = $region3
    $region8: #{tpu_custom_call.1} parent=1 // loop_exit
      _
    %1119 = vsyncpa [#allocation3], 1
    %s1120 = scalar_lea.sflag [#allocation3], 1
    %1121 = vsyncpa %s1120, 1

</llo_original>
